<compile_context>
chip_gen: v5e
topology: v5e:2x2
jax: 0.10.0
libtpu: 0.0.40
codegen_flags: <defaults>
</compile_context>

<pallas_src>
import jax
import jax.numpy as jnp
from jax.experimental import pallas as pl
from jax.experimental.pallas import tpu as pltpu

EPS = 1e-5


def _fused_kernel(x_ref, wt_ref, gamma_ref, beta_ref, o_ref):
    # x_ref:     (M, Cin)    input, pixel-major (lane-dense along Cin)
    # wt_ref:    (Cin, Cout) conv weight, pre-transposed (lane-dense along Cout)
    # gamma_ref: (1, Cout)   BN scale
    # beta_ref:  (1, Cout)   BN shift
    # o_ref:     (M, Cout)   output (lane-dense along Cout)
    x = jnp.maximum(x_ref[...], 0.0)                            # ReLU, f32
    y = jnp.dot(x, wt_ref[...], preferred_element_type=jnp.float32)  # (M, Cout)

    # BatchNorm2d (training mode): batch statistics over N*H*W (= M rows),
    # biased variance for normalization; two-pass form (numerically safe for
    # small M), affine folded into one per-channel scale/shift.
    m = jnp.float32(y.shape[0])
    mean = jnp.sum(y, axis=0, keepdims=True) / m                # (1, Cout)
    diff = y - mean
    var = jnp.sum(diff * diff, axis=0, keepdims=True) / m       # (1, Cout)
    scale = jax.lax.rsqrt(var + EPS) * gamma_ref[...]           # inv_std * gamma
    o_ref[...] = (diff * scale + beta_ref[...]).astype(o_ref.dtype)


def relu_conv1x1_bn(x_nchw, weight_t, gamma, beta):
    """x_nchw: (N, Cin, H, W); weight_t: (Cin, Cout) (1x1 conv weight, pre-transposed
    once at parameter creation); gamma, beta: (Cout,).  Returns (N, Cout, H, W)."""
    N, Cin, H, W = x_nchw.shape
    Cout = weight_t.shape[1]
    M = N * H * W

    # NCHW -> (M, Cin): pixels on the sublane axis, channels lane-dense.
    x_t = jnp.transpose(x_nchw, (0, 2, 3, 1)).reshape(M, Cin)

    g2d = gamma.reshape(1, Cout)
    b2d = beta.reshape(1, Cout)

    vmem_spec = pl.BlockSpec(memory_space=pltpu.MemorySpace.VMEM)

    out_t = pl.pallas_call(
        _fused_kernel,
        out_shape=jax.ShapeDtypeStruct((M, Cout), jnp.float32),
        in_specs=[vmem_spec, vmem_spec, vmem_spec, vmem_spec],
        out_specs=vmem_spec,
    )(x_t, weight_t, g2d, b2d)

    # TODO(synk): BatchNorm running_mean/running_var side-state (momentum=0.1) is not
    # updated; only the forward output (training-mode batch statistics) is reproduced.

    # (M, Cout) -> (N, H, W, Cout) -> NCHW
    return jnp.transpose(out_t.reshape(N, H, W, Cout), (0, 3, 1, 2))


if __name__ == "__main__":
    key = jax.random.PRNGKey(0)
    k_x, k_w, k_g, k_b = jax.random.split(key, 4)

    N, Cin, H, W = 1, 864, 7, 7
    Cout = 128

    x = jax.random.normal(k_x, (N, Cin, H, W), dtype=jnp.float32)
    # Conv2d(864, 128, 1, bias=False) weight: (Cout, Cin, 1, 1) -> (Cout, Cin).
    weight = jax.random.normal(k_w, (Cout, Cin), dtype=jnp.float32) * 0.02
    # Resident-parameter layout: transpose once at "init" to (Cin, Cout).
    weight_t = jnp.asarray(weight.T)
    # BatchNorm2d affine params (PyTorch default init gamma=1, beta=0; perturbed
    # deterministically so the affine path is exercised).
    gamma = 1.0 + 0.1 * jax.random.normal(k_g, (Cout,), dtype=jnp.float32)
    beta = 0.1 * jax.random.normal(k_b, (Cout,), dtype=jnp.float32)

    out = relu_conv1x1_bn(x, weight_t, gamma, beta)
    jax.block_until_ready(out)

    # Pure-JAX f32 reference (training-mode BN with batch statistics).
    xr = jnp.maximum(x, 0.0)
    yr = jnp.einsum("nchw,oc->nohw", xr, weight,
                    precision=jax.lax.Precision.HIGHEST)
    mean = jnp.mean(yr, axis=(0, 2, 3), keepdims=True)
    var = jnp.mean((yr - mean) ** 2, axis=(0, 2, 3), keepdims=True)
    ref = (yr - mean) * jax.lax.rsqrt(var + EPS) * gamma.reshape(1, Cout, 1, 1) \
          + beta.reshape(1, Cout, 1, 1)

    assert out.shape == (N, Cout, H, W)
    # Full-f32 kernel path: tight tolerance.
    assert jnp.allclose(out, ref, atol=1e-3, rtol=1e-3), (
        float(jnp.max(jnp.abs(out - ref))))

    print("KERNEL_OK")
</pallas_src>

<mosaic_0001>
module attributes {stable_mosaic.version = 11 : i64} {
  func.func @_fused_kernel(%arg0: memref<49x864xf32, #tpu.memory_space<vmem>>, %arg1: memref<864x128xf32, #tpu.memory_space<vmem>>, %arg2: memref<1x128xf32, #tpu.memory_space<vmem>>, %arg3: memref<1x128xf32, #tpu.memory_space<vmem>>, %arg4: memref<49x128xf32, #tpu.memory_space<vmem>>) attributes {dimension_semantics = [], scalar_prefetch = 0 : i64, scratch_operands = 0 : i64, tpu.core_type = #tpu.core_type<tc>} {
    %c0 = arith.constant 0 : index
    %c0_0 = arith.constant 0 : index
    %0 = vector.load %arg0[%c0, %c0_0] : memref<49x864xf32, #tpu.memory_space<vmem>>, vector<49x864xf32>
    %cst = arith.constant 0.000000e+00 : f32
    %1 = vector.broadcast %cst : f32 to vector<49x864xf32>
    %2 = arith.maximumf %0, %1 : vector<49x864xf32>
    %c0_1 = arith.constant 0 : index
    %c0_2 = arith.constant 0 : index
    %3 = vector.load %arg1[%c0_1, %c0_2] : memref<864x128xf32, #tpu.memory_space<vmem>>, vector<864x128xf32>
    %cst_3 = arith.constant dense<0.000000e+00> : vector<49x128xf32>
    %4 = tpu.matmul %2, %3, %cst_3 {dimension_numbers = #tpu.dot_dimension_numbers<[1], [0], [0], [1], [0, 0, 1, 1], [], []>} : vector<49x864xf32>, vector<864x128xf32>, vector<49x128xf32> -> vector<49x128xf32>
    %cst_4 = arith.constant dense<0.000000e+00> : vector<128xf32>
    %5 = vector.multi_reduction <add>, %4, %cst_4 [0] : vector<49x128xf32> to vector<128xf32>
    %6 = vector.shape_cast %5 : vector<128xf32> to vector<1x128xf32>
    %cst_5 = arith.constant 4.900000e+01 : f32
    %7 = vector.broadcast %cst_5 : f32 to vector<1x128xf32>
    %8 = arith.divf %6, %7 : vector<1x128xf32>
    %9 = vector.broadcast %8 : vector<1x128xf32> to vector<49x128xf32>
    %10 = arith.subf %4, %9 : vector<49x128xf32>
    %11 = arith.mulf %10, %10 : vector<49x128xf32>
    %cst_6 = arith.constant dense<0.000000e+00> : vector<128xf32>
    %12 = vector.multi_reduction <add>, %11, %cst_6 [0] : vector<49x128xf32> to vector<128xf32>
    %13 = vector.shape_cast %12 : vector<128xf32> to vector<1x128xf32>
    %cst_7 = arith.constant 4.900000e+01 : f32
    %14 = vector.broadcast %cst_7 : f32 to vector<1x128xf32>
    %15 = arith.divf %13, %14 : vector<1x128xf32>
    %cst_8 = arith.constant 9.99999974E-6 : f32
    %16 = vector.broadcast %cst_8 : f32 to vector<1x128xf32>
    %17 = arith.addf %15, %16 : vector<1x128xf32>
    %18 = math.rsqrt %17 : vector<1x128xf32>
    %c0_9 = arith.constant 0 : index
    %c0_10 = arith.constant 0 : index
    %19 = vector.load %arg2[%c0_9, %c0_10] : memref<1x128xf32, #tpu.memory_space<vmem>>, vector<1x128xf32>
    %20 = arith.mulf %18, %19 : vector<1x128xf32>
    %21 = vector.broadcast %20 : vector<1x128xf32> to vector<49x128xf32>
    %22 = arith.mulf %10, %21 : vector<49x128xf32>
    %c0_11 = arith.constant 0 : index
    %c0_12 = arith.constant 0 : index
    %23 = vector.load %arg3[%c0_11, %c0_12] : memref<1x128xf32, #tpu.memory_space<vmem>>, vector<1x128xf32>
    %24 = vector.broadcast %23 : vector<1x128xf32> to vector<49x128xf32>
    %25 = arith.addf %22, %24 : vector<49x128xf32>
    %c0_13 = arith.constant 0 : index
    %c0_14 = arith.constant 0 : index
    %26 = vector.load %arg4[%c0_13, %c0_14] : memref<49x128xf32, #tpu.memory_space<vmem>>, vector<49x128xf32>
    tpu.vector_store %arg4[%c0_13, %c0_14], %25 {strides = array<i32>} : memref<49x128xf32, #tpu.memory_space<vmem>>, vector<49x128xf32>,
    return
  }
}

</mosaic_0001>

<llo_original>
// kernel: tpu_custom_call.1
$region0: #{tpu_custom_call.1}
  #allocation0 [shape = 'u32[]', space=smem, size = 0x4, offset = 0x4, fixed_abs, tag = 'smem constant byte address 0x4 - core index']
  #allocation1 [shape = 'u32[72,128]{1,0:T(1,128)}', space=vmem, size = 0x9000, scoped, tag = 'internal scratch']
  %s0 = inlined_call_operand.hbm [shape: f32[49,864], index: 0, kind: input, shape index: {}]
  %s1 = inlined_call_operand.hbm [shape: f32[864,128], index: 1, kind: input, shape index: {}]
  %s2 = inlined_call_operand.vmem [shape: f32[1,128], index: 2, kind: input, shape index: {}]
  %s3 = inlined_call_operand.vmem [shape: f32[1,128], index: 3, kind: input, shape index: {}]
  %s4 = inlined_call_operand.hbm [shape: f32[49,128], index: 4, kind: output, shape index: {}]
  %s5 = sld [smem:[#allocation0]]
  $region34: #{tpu_custom_call.1} parent=0
    _
  %s7 = ssub.s32 1, %s5
  %s8 = scalar_select 0, %s7, %s5
  $region1: #{tpu_custom_call.1} parent=0
    #allocation2 [shape = 'u8[200704]{0}', space=vmem, size = 0x31000, scoped, tag = 'input window, operand 0, single buffered']
    #allocation3 [shape = 's32[1]{0}', space=sflag, size = 0x4, scoped, tag = 'scoped memory for tpu_custom_call.1']
    #allocation4 [shape = 's32[1]{0}', space=sflag, size = 0x4, scoped, tag = 'scoped memory for tpu_custom_call.1']
    #allocation5 [shape = 'u8[442368]{0}', space=vmem, size = 0x6c000, scoped, tag = 'input window, operand 1, single buffered']
    #allocation6 [shape = 's32[1]{0}', space=sflag, size = 0x4, scoped, tag = 'scoped memory for tpu_custom_call.1']
    #allocation7 [shape = 'u8[28672]{0}', space=vmem, size = 0x7000, scoped, tag = 'output window, operand 0, single buffered']
    %9 = vsyncpa [#allocation3], 0
    %10 = vsyncpa [#allocation6], 0
    %11 = vsyncpa [#allocation4], 0
    // Predicated region
    $region2: #{tpu_custom_call.1} parent=1 // pred_check
      _
    $region3: #{tpu_custom_call.1} parent=1 // pred_check_branch
      %13 = sbr.rel (0) target = $region5
    $region4: #{tpu_custom_call.1} parent=1 // pred_region
      %15 = vsyncadd [#allocation3], 0
      %s16 = sshll.u32 %s0, 4
      %s17 = int_to_ptr.hbm [resolvable:$true] %s16
      %s18 = sshll.u32 [#allocation2], 4
      %s19 = int_to_ptr.vmem [resolvable:$true] %s18
      %24 = dma.hbm_to_vmem [thread:$0]  %s17, 6272, %s19, [#allocation3], 896, 896, 56
    $region5: #{tpu_custom_call.1} parent=1 // pred_fallthru
      _
    // Predicated region
    $region6: #{tpu_custom_call.1} parent=1 // pred_check
      _
    $region7: #{tpu_custom_call.1} parent=1 // pred_check_branch
      %26 = sbr.rel (0) target = $region9
    $region8: #{tpu_custom_call.1} parent=1 // pred_region
      %28 = vsyncadd [#allocation6], 0
      %s29 = sshll.u32 %s1, 4
      %s30 = int_to_ptr.hbm [resolvable:$true] %s29
      %s31 = sshll.u32 [#allocation5], 4
      %s32 = int_to_ptr.vmem [resolvable:$true] %s31
      %37 = dma.hbm_to_vmem [thread:$0]  %s30, 13824, %s32, [#allocation6], 128, 128, 8
    $region9: #{tpu_custom_call.1} parent=1 // pred_fallthru
      _
    // Predicated region
    $region10: #{tpu_custom_call.1} parent=1 // pred_check
      _
    $region11: #{tpu_custom_call.1} parent=1 // pred_check_branch
      %39 = sbr.rel (0) target = $region13
    $region12: #{tpu_custom_call.1} parent=1 // pred_region
      _
    $region13: #{tpu_custom_call.1} parent=1 // pred_fallthru
      _
    // Predicated region
    $region14: #{tpu_custom_call.1} parent=1 // pred_check
      _
    $region15: #{tpu_custom_call.1} parent=1 // pred_check_branch
      %41 = sbr.rel (0) target = $region17
    $region16: #{tpu_custom_call.1} parent=1 // pred_region
      _
    $region17: #{tpu_custom_call.1} parent=1 // pred_fallthru
      _
    // Predicated region
    $region18: #{tpu_custom_call.1} parent=1 // pred_check
      _
    $region19: #{tpu_custom_call.1} parent=1 // pred_check_branch
      %43 = sbr.rel (0) target = $region21
    $region20: #{tpu_custom_call.1} parent=1 // pred_region
      %45 = dma.done [#allocation3], 6272
    $region21: #{tpu_custom_call.1} parent=1 // pred_fallthru
      _
    // Predicated region
    $region22: #{tpu_custom_call.1} parent=1 // pred_check
      _
    $region23: #{tpu_custom_call.1} parent=1 // pred_check_branch
      %47 = sbr.rel (0) target = $region25
    $region24: #{tpu_custom_call.1} parent=1 // pred_region
      %49 = dma.done [#allocation6], 13824
    $region25: #{tpu_custom_call.1} parent=1 // pred_fallthru
      _
    %v50 = vld [vmem:[#allocation2] sm:$0xff]
    %v51 = vld [vmem:[#allocation2 + $0x8] sm:$0xff]
    %v52 = vld [vmem:[#allocation2 + $0x10] sm:$0xff]
    %v53 = vld [vmem:[#allocation2 + $0x18] sm:$0xff]
    %v54 = vld [vmem:[#allocation2 + $0x20] sm:$0xff]
    %v55 = vld [vmem:[#allocation2 + $0x28] sm:$0xff]
    %v56 = vld [vmem:[#allocation2 + $0x30] sm:$0xff]
    %v57 = vld [vmem:[#allocation2 + $0x38] sm:$0xff]
    %v58 = vld [vmem:[#allocation2 + $0x40] sm:$0xff]
    %v59 = vld [vmem:[#allocation2 + $0x48] sm:$0xff]
    %v60 = vld [vmem:[#allocation2 + $0x50] sm:$0xff]
    %v61 = vld [vmem:[#allocation2 + $0x58] sm:$0xff]
    %v62 = vld [vmem:[#allocation2 + $0x60] sm:$0xff]
    %v63 = vld [vmem:[#allocation2 + $0x68] sm:$0xff]
    %v64 = vld [vmem:[#allocation2 + $0x70] sm:$0xff]
    %v65 = vld [vmem:[#allocation2 + $0x78] sm:$0xff]
    %v66 = vld [vmem:[#allocation2 + $0x80] sm:$0xff]
    %v67 = vld [vmem:[#allocation2 + $0x88] sm:$0xff]
    %v68 = vld [vmem:[#allocation2 + $0x90] sm:$0xff]
    %v69 = vld [vmem:[#allocation2 + $0x98] sm:$0xff]
    %v70 = vld [vmem:[#allocation2 + $0xa0] sm:$0xff]
    %v71 = vld [vmem:[#allocation2 + $0xa8] sm:$0xff]
    %v72 = vld [vmem:[#allocation2 + $0xb0] sm:$0xff]
    %v73 = vld [vmem:[#allocation2 + $0xb8] sm:$0xff]
    %v74 = vld [vmem:[#allocation2 + $0xc0] sm:$0xff]
    %v75 = vld [vmem:[#allocation2 + $0xc8] sm:$0xff]
    %v76 = vld [vmem:[#allocation2 + $0xd0] sm:$0xff]
    %v77 = vld [vmem:[#allocation2 + $0xd8] sm:$0xff]
    %v78 = vld [vmem:[#allocation2 + $0xe0] sm:$0xff]
    %v79 = vld [vmem:[#allocation2 + $0xe8] sm:$0xff]
    %v80 = vld [vmem:[#allocation2 + $0xf0] sm:$0xff]
    %v81 = vld [vmem:[#allocation2 + $0xf8] sm:$0xff]
    %v82 = vld [vmem:[#allocation2 + $0x100] sm:$0xff]
    %v83 = vld [vmem:[#allocation2 + $0x108] sm:$0xff]
    %v84 = vld [vmem:[#allocation2 + $0x110] sm:$0xff]
    %v85 = vld [vmem:[#allocation2 + $0x118] sm:$0xff]
    %v86 = vld [vmem:[#allocation2 + $0x120] sm:$0xff]
    %v87 = vld [vmem:[#allocation2 + $0x128] sm:$0xff]
    %v88 = vld [vmem:[#allocation2 + $0x130] sm:$0xff]
    %v89 = vld [vmem:[#allocation2 + $0x138] sm:$0xff]
    %v90 = vld [vmem:[#allocation2 + $0x140] sm:$0xff]
    %v91 = vld [vmem:[#allocation2 + $0x148] sm:$0xff]
    %v92 = vld [vmem:[#allocation2 + $0x150] sm:$0x1]
    %v93 = vld [vmem:[#allocation2 + $0x158] sm:$0x1]
    %v94 = vld [vmem:[#allocation2 + $0x160] sm:$0x1]
    %v95 = vld [vmem:[#allocation2 + $0x168] sm:$0x1]
    %v96 = vld [vmem:[#allocation2 + $0x170] sm:$0x1]
    %v97 = vld [vmem:[#allocation2 + $0x178] sm:$0x1]
    %v98 = vld [vmem:[#allocation2 + $0x180] sm:$0x1]
    %v99 = vmax.f32 %v50, 0.0
    %v100 = vmax.f32 %v51, 0.0
    %v101 = vmax.f32 %v52, 0.0
    %v102 = vmax.f32 %v53, 0.0
    %v103 = vmax.f32 %v54, 0.0
    %v104 = vmax.f32 %v55, 0.0
    %v105 = vmax.f32 %v56, 0.0
    %v106 = vmax.f32 %v57, 0.0
    %v107 = vmax.f32 %v58, 0.0
    %v108 = vmax.f32 %v59, 0.0
    %v109 = vmax.f32 %v60, 0.0
    %v110 = vmax.f32 %v61, 0.0
    %v111 = vmax.f32 %v62, 0.0
    %v112 = vmax.f32 %v63, 0.0
    %v113 = vmax.f32 %v64, 0.0
    %v114 = vmax.f32 %v65, 0.0
    %v115 = vmax.f32 %v66, 0.0
    %v116 = vmax.f32 %v67, 0.0
    %v117 = vmax.f32 %v68, 0.0
    %v118 = vmax.f32 %v69, 0.0
    %v119 = vmax.f32 %v70, 0.0
    %v120 = vmax.f32 %v71, 0.0
    %v121 = vmax.f32 %v72, 0.0
    %v122 = vmax.f32 %v73, 0.0
    %v123 = vmax.f32 %v74, 0.0
    %v124 = vmax.f32 %v75, 0.0
    %v125 = vmax.f32 %v76, 0.0
    %v126 = vmax.f32 %v77, 0.0
    %v127 = vmax.f32 %v78, 0.0
    %v128 = vmax.f32 %v79, 0.0
    %v129 = vmax.f32 %v80, 0.0
    %v130 = vmax.f32 %v81, 0.0
    %v131 = vmax.f32 %v82, 0.0
    %v132 = vmax.f32 %v83, 0.0
    %v133 = vmax.f32 %v84, 0.0
    %v134 = vmax.f32 %v85, 0.0
    %v135 = vmax.f32 %v86, 0.0
    %v136 = vmax.f32 %v87, 0.0
    %v137 = vmax.f32 %v88, 0.0
    %v138 = vmax.f32 %v89, 0.0
    %v139 = vmax.f32 %v90, 0.0
    %v140 = vmax.f32 %v91, 0.0
    %v141 = vmax.f32 %v92, 0.0
    %v142 = vmax.f32 %v93, 0.0
    %v143 = vmax.f32 %v94, 0.0
    %v144 = vmax.f32 %v95, 0.0
    %v145 = vmax.f32 %v96, 0.0
    %v146 = vmax.f32 %v97, 0.0
    %v147 = vmax.f32 %v98, 0.0
    %v148 = vld [vmem:[#allocation5] sm:$0xff]
    %v149 = vld [vmem:[#allocation5 + $0x8] sm:$0xff]
    %v150 = vld [vmem:[#allocation5 + $0x10] sm:$0xff]
    %v151 = vld [vmem:[#allocation5 + $0x18] sm:$0xff]
    %v152 = vld [vmem:[#allocation5 + $0x20] sm:$0xff]
    %v153 = vld [vmem:[#allocation5 + $0x28] sm:$0xff]
    %v154 = vld [vmem:[#allocation5 + $0x30] sm:$0xff]
    %v155 = vld [vmem:[#allocation5 + $0x38] sm:$0xff]
    %v156 = vld [vmem:[#allocation5 + $0x40] sm:$0xff]
    %v157 = vld [vmem:[#allocation5 + $0x48] sm:$0xff]
    %v158 = vld [vmem:[#allocation5 + $0x50] sm:$0xff]
    %v159 = vld [vmem:[#allocation5 + $0x58] sm:$0xff]
    %v160 = vld [vmem:[#allocation5 + $0x60] sm:$0xff]
    %v161 = vld [vmem:[#allocation5 + $0x68] sm:$0xff]
    %v162 = vld [vmem:[#allocation5 + $0x70] sm:$0xff]
    %v163 = vld [vmem:[#allocation5 + $0x78] sm:$0xff]
    %v164 = vld [vmem:[#allocation5 + $0x80] sm:$0xff]
    %v165 = vld [vmem:[#allocation5 + $0x88] sm:$0xff]
    %v166 = vld [vmem:[#allocation5 + $0x90] sm:$0xff]
    %v167 = vld [vmem:[#allocation5 + $0x98] sm:$0xff]
    %v168 = vld [vmem:[#allocation5 + $0xa0] sm:$0xff]
    %v169 = vld [vmem:[#allocation5 + $0xa8] sm:$0xff]
    %v170 = vld [vmem:[#allocation5 + $0xb0] sm:$0xff]
    %v171 = vld [vmem:[#allocation5 + $0xb8] sm:$0xff]
    %v172 = vld [vmem:[#allocation5 + $0xc0] sm:$0xff]
    %v173 = vld [vmem:[#allocation5 + $0xc8] sm:$0xff]
    %v174 = vld [vmem:[#allocation5 + $0xd0] sm:$0xff]
    %v175 = vld [vmem:[#allocation5 + $0xd8] sm:$0xff]
    %v176 = vld [vmem:[#allocation5 + $0xe0] sm:$0xff]
    %v177 = vld [vmem:[#allocation5 + $0xe8] sm:$0xff]
    %v178 = vld [vmem:[#allocation5 + $0xf0] sm:$0xff]
    %v179 = vld [vmem:[#allocation5 + $0xf8] sm:$0xff]
    %v180 = vld [vmem:[#allocation5 + $0x100] sm:$0xff]
    %v181 = vld [vmem:[#allocation5 + $0x108] sm:$0xff]
    %v182 = vld [vmem:[#allocation5 + $0x110] sm:$0xff]
    %v183 = vld [vmem:[#allocation5 + $0x118] sm:$0xff]
    %v184 = vld [vmem:[#allocation5 + $0x120] sm:$0xff]
    %v185 = vld [vmem:[#allocation5 + $0x128] sm:$0xff]
    %v186 = vld [vmem:[#allocation5 + $0x130] sm:$0xff]
    %v187 = vld [vmem:[#allocation5 + $0x138] sm:$0xff]
    %v188 = vld [vmem:[#allocation5 + $0x140] sm:$0xff]
    %v189 = vld [vmem:[#allocation5 + $0x148] sm:$0xff]
    %v190 = vld [vmem:[#allocation5 + $0x150] sm:$0xff]
    %v191 = vld [vmem:[#allocation5 + $0x158] sm:$0xff]
    %v192 = vld [vmem:[#allocation5 + $0x160] sm:$0xff]
    %v193 = vld [vmem:[#allocation5 + $0x168] sm:$0xff]
    %v194 = vld [vmem:[#allocation5 + $0x170] sm:$0xff]
    %v195 = vld [vmem:[#allocation5 + $0x178] sm:$0xff]
    %v196 = vld [vmem:[#allocation5 + $0x180] sm:$0xff]
    %v197 = vld [vmem:[#allocation5 + $0x188] sm:$0xff]
    %v198 = vld [vmem:[#allocation5 + $0x190] sm:$0xff]
    %v199 = vld [vmem:[#allocation5 + $0x198] sm:$0xff]
    %v200 = vld [vmem:[#allocation5 + $0x1a0] sm:$0xff]
    %v201 = vld [vmem:[#allocation5 + $0x1a8] sm:$0xff]
    %v202 = vld [vmem:[#allocation5 + $0x1b0] sm:$0xff]
    %v203 = vld [vmem:[#allocation5 + $0x1b8] sm:$0xff]
    %v204 = vld [vmem:[#allocation5 + $0x1c0] sm:$0xff]
    %v205 = vld [vmem:[#allocation5 + $0x1c8] sm:$0xff]
    %v206 = vld [vmem:[#allocation5 + $0x1d0] sm:$0xff]
    %v207 = vld [vmem:[#allocation5 + $0x1d8] sm:$0xff]
    %v208 = vld [vmem:[#allocation5 + $0x1e0] sm:$0xff]
    %v209 = vld [vmem:[#allocation5 + $0x1e8] sm:$0xff]
    %v210 = vld [vmem:[#allocation5 + $0x1f0] sm:$0xff]
    %v211 = vld [vmem:[#allocation5 + $0x1f8] sm:$0xff]
    %v212 = vld [vmem:[#allocation5 + $0x200] sm:$0xff]
    %v213 = vld [vmem:[#allocation5 + $0x208] sm:$0xff]
    %v214 = vld [vmem:[#allocation5 + $0x210] sm:$0xff]
    %v215 = vld [vmem:[#allocation5 + $0x218] sm:$0xff]
    %v216 = vld [vmem:[#allocation5 + $0x220] sm:$0xff]
    %v217 = vld [vmem:[#allocation5 + $0x228] sm:$0xff]
    %v218 = vld [vmem:[#allocation5 + $0x230] sm:$0xff]
    %v219 = vld [vmem:[#allocation5 + $0x238] sm:$0xff]
    %v220 = vld [vmem:[#allocation5 + $0x240] sm:$0xff]
    %v221 = vld [vmem:[#allocation5 + $0x248] sm:$0xff]
    %v222 = vld [vmem:[#allocation5 + $0x250] sm:$0xff]
    %v223 = vld [vmem:[#allocation5 + $0x258] sm:$0xff]
    %v224 = vld [vmem:[#allocation5 + $0x260] sm:$0xff]
    %v225 = vld [vmem:[#allocation5 + $0x268] sm:$0xff]
    %v226 = vld [vmem:[#allocation5 + $0x270] sm:$0xff]
    %v227 = vld [vmem:[#allocation5 + $0x278] sm:$0xff]
    %v228 = vld [vmem:[#allocation5 + $0x280] sm:$0xff]
    %v229 = vld [vmem:[#allocation5 + $0x288] sm:$0xff]
    %v230 = vld [vmem:[#allocation5 + $0x290] sm:$0xff]
    %v231 = vld [vmem:[#allocation5 + $0x298] sm:$0xff]
    %v232 = vld [vmem:[#allocation5 + $0x2a0] sm:$0xff]
    %v233 = vld [vmem:[#allocation5 + $0x2a8] sm:$0xff]
    %v234 = vld [vmem:[#allocation5 + $0x2b0] sm:$0xff]
    %v235 = vld [vmem:[#allocation5 + $0x2b8] sm:$0xff]
    %v236 = vld [vmem:[#allocation5 + $0x2c0] sm:$0xff]
    %v237 = vld [vmem:[#allocation5 + $0x2c8] sm:$0xff]
    %v238 = vld [vmem:[#allocation5 + $0x2d0] sm:$0xff]
    %v239 = vld [vmem:[#allocation5 + $0x2d8] sm:$0xff]
    %v240 = vld [vmem:[#allocation5 + $0x2e0] sm:$0xff]
    %v241 = vld [vmem:[#allocation5 + $0x2e8] sm:$0xff]
    %v242 = vld [vmem:[#allocation5 + $0x2f0] sm:$0xff]
    %v243 = vld [vmem:[#allocation5 + $0x2f8] sm:$0xff]
    %v244 = vld [vmem:[#allocation5 + $0x300] sm:$0xff]
    %v245 = vld [vmem:[#allocation5 + $0x308] sm:$0xff]
    %v246 = vld [vmem:[#allocation5 + $0x310] sm:$0xff]
    %v247 = vld [vmem:[#allocation5 + $0x318] sm:$0xff]
    %v248 = vld [vmem:[#allocation5 + $0x320] sm:$0xff]
    %v249 = vld [vmem:[#allocation5 + $0x328] sm:$0xff]
    %v250 = vld [vmem:[#allocation5 + $0x330] sm:$0xff]
    %v251 = vld [vmem:[#allocation5 + $0x338] sm:$0xff]
    %v252 = vld [vmem:[#allocation5 + $0x340] sm:$0xff]
    %v253 = vld [vmem:[#allocation5 + $0x348] sm:$0xff]
    %v254 = vld [vmem:[#allocation5 + $0x350] sm:$0xff]
    %v255 = vld [vmem:[#allocation5 + $0x358] sm:$0xff]
    %vm256 = vcmask 785408
    %v258 = vsel %vm256, %v105, 0
    %v261 = vsel %vm256, %v112, 0
    %v264 = vsel %vm256, %v119, 0
    %v267 = vsel %vm256, %v126, 0
    %v270 = vsel %vm256, %v133, 0
    %v273 = vsel %vm256, %v140, 0
    %v276 = vsel %vm256, %v147, 0
    %278 = vmatpush.msra.mxu0 %v163
    %279 = vmatpush.msra.mxu0 %v162
    %280 = vmatpush.msra.mxu0 %v161
    %281 = vmatpush.msra.mxu0 %v160
    %282 = vmatpush.msra.mxu0 %v159
    %283 = vmatpush.msra.mxu0 %v158
    %284 = vmatpush.msra.mxu0 %v157
    %285 = vmatpush.msra.mxu0 %v156
    %286 = vmatpush.msra.mxu0 %v155
    %287 = vmatpush.msra.mxu0 %v154
    %288 = vmatpush.msra.mxu0 %v153
    %289 = vmatpush.msra.mxu0 %v152
    %290 = vmatpush.msra.mxu0 %v151
    %291 = vmatpush.msra.mxu0 %v150
    %292 = vmatpush.msra.mxu0 %v149
    %293 = vmatpush.msra.mxu0 %v148
    %294 = vmatmul.f32.gmra.mxu0 %v99
    %v295 = vpop.f32.mrf.mxu0
    %v296 = vadd.f32 0.0, %v295
    %297 = vmatmul.f32.gmra.mxu0 %v106
    %v298 = vpop.f32.mrf.mxu0
    %v299 = vadd.f32 0.0, %v298
    %300 = vmatmul.f32.gmra.mxu0 %v113
    %v301 = vpop.f32.mrf.mxu0
    %v302 = vadd.f32 0.0, %v301
    %303 = vmatmul.f32.gmra.mxu0 %v120
    %v304 = vpop.f32.mrf.mxu0
    %v305 = vadd.f32 0.0, %v304
    %306 = vmatmul.f32.gmra.mxu0 %v127
    %v307 = vpop.f32.mrf.mxu0
    %v308 = vadd.f32 0.0, %v307
    %309 = vmatmul.f32.gmra.mxu0 %v134
    %v310 = vpop.f32.mrf.mxu0
    %v311 = vadd.f32 0.0, %v310
    %312 = vmatmul.f32.gmra.mxu0 %v141
    %v313 = vpop.f32.mrf.mxu0
    %v314 = vadd.f32 0.0, %v313
    %315 = vdwg.mxu0
    %316 = vmatpush.msra.mxu0 %v179
    %317 = vmatpush.msra.mxu0 %v178
    %318 = vmatpush.msra.mxu0 %v177
    %319 = vmatpush.msra.mxu0 %v176
    %320 = vmatpush.msra.mxu0 %v175
    %321 = vmatpush.msra.mxu0 %v174
    %322 = vmatpush.msra.mxu0 %v173
    %323 = vmatpush.msra.mxu0 %v172
    %324 = vmatpush.msra.mxu0 %v171
    %325 = vmatpush.msra.mxu0 %v170
    %326 = vmatpush.msra.mxu0 %v169
    %327 = vmatpush.msra.mxu0 %v168
    %328 = vmatpush.msra.mxu0 %v167
    %329 = vmatpush.msra.mxu0 %v166
    %330 = vmatpush.msra.mxu0 %v165
    %331 = vmatpush.msra.mxu0 %v164
    %332 = vmatmul.f32.gmra.mxu0 %v100
    %v333 = vpop.f32.mrf.mxu0
    %v334 = vadd.f32 %v296, %v333
    %335 = vmatmul.f32.gmra.mxu0 %v107
    %v336 = vpop.f32.mrf.mxu0
    %v337 = vadd.f32 %v299, %v336
    %338 = vmatmul.f32.gmra.mxu0 %v114
    %v339 = vpop.f32.mrf.mxu0
    %v340 = vadd.f32 %v302, %v339
    %341 = vmatmul.f32.gmra.mxu0 %v121
    %v342 = vpop.f32.mrf.mxu0
    %v343 = vadd.f32 %v305, %v342
    %344 = vmatmul.f32.gmra.mxu0 %v128
    %v345 = vpop.f32.mrf.mxu0
    %v346 = vadd.f32 %v308, %v345
    %347 = vmatmul.f32.gmra.mxu0 %v135
    %v348 = vpop.f32.mrf.mxu0
    %v349 = vadd.f32 %v311, %v348
    %350 = vmatmul.f32.gmra.mxu0 %v142
    %v351 = vpop.f32.mrf.mxu0
    %v352 = vadd.f32 %v314, %v351
    %353 = vdwg.mxu0
    %354 = vmatpush.msra.mxu0 %v195
    %355 = vmatpush.msra.mxu0 %v194
    %356 = vmatpush.msra.mxu0 %v193
    %357 = vmatpush.msra.mxu0 %v192
    %358 = vmatpush.msra.mxu0 %v191
    %359 = vmatpush.msra.mxu0 %v190
    %360 = vmatpush.msra.mxu0 %v189
    %361 = vmatpush.msra.mxu0 %v188
    %362 = vmatpush.msra.mxu0 %v187
    %363 = vmatpush.msra.mxu0 %v186
    %364 = vmatpush.msra.mxu0 %v185
    %365 = vmatpush.msra.mxu0 %v184
    %366 = vmatpush.msra.mxu0 %v183
    %367 = vmatpush.msra.mxu0 %v182
    %368 = vmatpush.msra.mxu0 %v181
    %369 = vmatpush.msra.mxu0 %v180
    %370 = vmatmul.f32.gmra.mxu0 %v101
    %v371 = vpop.f32.mrf.mxu0
    %v372 = vadd.f32 %v334, %v371
    %373 = vmatmul.f32.gmra.mxu0 %v108
    %v374 = vpop.f32.mrf.mxu0
    %v375 = vadd.f32 %v337, %v374
    %376 = vmatmul.f32.gmra.mxu0 %v115
    %v377 = vpop.f32.mrf.mxu0
    %v378 = vadd.f32 %v340, %v377
    %379 = vmatmul.f32.gmra.mxu0 %v122
    %v380 = vpop.f32.mrf.mxu0
    %v381 = vadd.f32 %v343, %v380
    %382 = vmatmul.f32.gmra.mxu0 %v129
    %v383 = vpop.f32.mrf.mxu0
    %v384 = vadd.f32 %v346, %v383
    %385 = vmatmul.f32.gmra.mxu0 %v136
    %v386 = vpop.f32.mrf.mxu0
    %v387 = vadd.f32 %v349, %v386
    %388 = vmatmul.f32.gmra.mxu0 %v143
    %v389 = vpop.f32.mrf.mxu0
    %v390 = vadd.f32 %v352, %v389
    %391 = vdwg.mxu0
    %392 = vmatpush.msra.mxu0 %v211
    %393 = vmatpush.msra.mxu0 %v210
    %394 = vmatpush.msra.mxu0 %v209
    %395 = vmatpush.msra.mxu0 %v208
    %396 = vmatpush.msra.mxu0 %v207
    %397 = vmatpush.msra.mxu0 %v206
    %398 = vmatpush.msra.mxu0 %v205
    %399 = vmatpush.msra.mxu0 %v204
    %400 = vmatpush.msra.mxu0 %v203
    %401 = vmatpush.msra.mxu0 %v202
    %402 = vmatpush.msra.mxu0 %v201
    %403 = vmatpush.msra.mxu0 %v200
    %404 = vmatpush.msra.mxu0 %v199
    %405 = vmatpush.msra.mxu0 %v198
    %406 = vmatpush.msra.mxu0 %v197
    %407 = vmatpush.msra.mxu0 %v196
    %408 = vmatmul.f32.gmra.mxu0 %v102
    %v409 = vpop.f32.mrf.mxu0
    %v410 = vadd.f32 %v372, %v409
    %411 = vmatmul.f32.gmra.mxu0 %v109
    %v412 = vpop.f32.mrf.mxu0
    %v413 = vadd.f32 %v375, %v412
    %414 = vmatmul.f32.gmra.mxu0 %v116
    %v415 = vpop.f32.mrf.mxu0
    %v416 = vadd.f32 %v378, %v415
    %417 = vmatmul.f32.gmra.mxu0 %v123
    %v418 = vpop.f32.mrf.mxu0
    %v419 = vadd.f32 %v381, %v418
    %420 = vmatmul.f32.gmra.mxu0 %v130
    %v421 = vpop.f32.mrf.mxu0
    %v422 = vadd.f32 %v384, %v421
    %423 = vmatmul.f32.gmra.mxu0 %v137
    %v424 = vpop.f32.mrf.mxu0
    %v425 = vadd.f32 %v387, %v424
    %426 = vmatmul.f32.gmra.mxu0 %v144
    %v427 = vpop.f32.mrf.mxu0
    %v428 = vadd.f32 %v390, %v427
    %429 = vdwg.mxu0
    %430 = vmatpush.msra.mxu0 %v227
    %431 = vmatpush.msra.mxu0 %v226
    %432 = vmatpush.msra.mxu0 %v225
    %433 = vmatpush.msra.mxu0 %v224
    %434 = vmatpush.msra.mxu0 %v223
    %435 = vmatpush.msra.mxu0 %v222
    %436 = vmatpush.msra.mxu0 %v221
    %437 = vmatpush.msra.mxu0 %v220
    %438 = vmatpush.msra.mxu0 %v219
    %439 = vmatpush.msra.mxu0 %v218
    %440 = vmatpush.msra.mxu0 %v217
    %441 = vmatpush.msra.mxu0 %v216
    %442 = vmatpush.msra.mxu0 %v215
    %443 = vmatpush.msra.mxu0 %v214
    %444 = vmatpush.msra.mxu0 %v213
    %445 = vmatpush.msra.mxu0 %v212
    %446 = vmatmul.f32.gmra.mxu0 %v103
    %v447 = vpop.f32.mrf.mxu0
    %v448 = vadd.f32 %v410, %v447
    %449 = vmatmul.f32.gmra.mxu0 %v110
    %v450 = vpop.f32.mrf.mxu0
    %v451 = vadd.f32 %v413, %v450
    %452 = vmatmul.f32.gmra.mxu0 %v117
    %v453 = vpop.f32.mrf.mxu0
    %v454 = vadd.f32 %v416, %v453
    %455 = vmatmul.f32.gmra.mxu0 %v124
    %v456 = vpop.f32.mrf.mxu0
    %v457 = vadd.f32 %v419, %v456
    %458 = vmatmul.f32.gmra.mxu0 %v131
    %v459 = vpop.f32.mrf.mxu0
    %v460 = vadd.f32 %v422, %v459
    %461 = vmatmul.f32.gmra.mxu0 %v138
    %v462 = vpop.f32.mrf.mxu0
    %v463 = vadd.f32 %v425, %v462
    %464 = vmatmul.f32.gmra.mxu0 %v145
    %v465 = vpop.f32.mrf.mxu0
    %v466 = vadd.f32 %v428, %v465
    %467 = vdwg.mxu0
    %468 = vmatpush.msra.mxu0 %v243
    %469 = vmatpush.msra.mxu0 %v242
    %470 = vmatpush.msra.mxu0 %v241
    %471 = vmatpush.msra.mxu0 %v240
    %472 = vmatpush.msra.mxu0 %v239
    %473 = vmatpush.msra.mxu0 %v238
    %474 = vmatpush.msra.mxu0 %v237
    %475 = vmatpush.msra.mxu0 %v236
    %476 = vmatpush.msra.mxu0 %v235
    %477 = vmatpush.msra.mxu0 %v234
    %478 = vmatpush.msra.mxu0 %v233
    %479 = vmatpush.msra.mxu0 %v232
    %480 = vmatpush.msra.mxu0 %v231
    %481 = vmatpush.msra.mxu0 %v230
    %482 = vmatpush.msra.mxu0 %v229
    %483 = vmatpush.msra.mxu0 %v228
    %484 = vmatmul.f32.gmra.mxu0 %v104
    %v485 = vpop.f32.mrf.mxu0
    %v486 = vadd.f32 %v448, %v485
    %487 = vmatmul.f32.gmra.mxu0 %v111
    %v488 = vpop.f32.mrf.mxu0
    %v489 = vadd.f32 %v451, %v488
    %490 = vmatmul.f32.gmra.mxu0 %v118
    %v491 = vpop.f32.mrf.mxu0
    %v492 = vadd.f32 %v454, %v491
    %493 = vmatmul.f32.gmra.mxu0 %v125
    %v494 = vpop.f32.mrf.mxu0
    %v495 = vadd.f32 %v457, %v494
    %496 = vmatmul.f32.gmra.mxu0 %v132
    %v497 = vpop.f32.mrf.mxu0
    %v498 = vadd.f32 %v460, %v497
    %499 = vmatmul.f32.gmra.mxu0 %v139
    %v500 = vpop.f32.mrf.mxu0
    %v501 = vadd.f32 %v463, %v500
    %502 = vmatmul.f32.gmra.mxu0 %v146
    %v503 = vpop.f32.mrf.mxu0
    %v504 = vadd.f32 %v466, %v503
    %505 = vdwg.mxu0
    %506 = vmatpush.msra.mxu0 0.0
    %507 = vmatpush.msra.mxu0 0.0
    %508 = vmatpush.msra.mxu0 0.0
    %509 = vmatpush.msra.mxu0 0.0
    %510 = vmatpush.msra.mxu0 %v255
    %511 = vmatpush.msra.mxu0 %v254
    %512 = vmatpush.msra.mxu0 %v253
    %513 = vmatpush.msra.mxu0 %v252
    %514 = vmatpush.msra.mxu0 %v251
    %515 = vmatpush.msra.mxu0 %v250
    %516 = vmatpush.msra.mxu0 %v249
    %517 = vmatpush.msra.mxu0 %v248
    %518 = vmatpush.msra.mxu0 %v247
    %519 = vmatpush.msra.mxu0 %v246
    %520 = vmatpush.msra.mxu0 %v245
    %521 = vmatpush.msra.mxu0 %v244
    %522 = vmatmul.f32.gmra.mxu0 %v258
    %v523 = vpop.f32.mrf.mxu0
    %v524 = vadd.f32 %v486, %v523
    %525 = vmatmul.f32.gmra.mxu0 %v261
    %v526 = vpop.f32.mrf.mxu0
    %v527 = vadd.f32 %v489, %v526
    %528 = vmatmul.f32.gmra.mxu0 %v264
    %v529 = vpop.f32.mrf.mxu0
    %v530 = vadd.f32 %v492, %v529
    %531 = vmatmul.f32.gmra.mxu0 %v267
    %v532 = vpop.f32.mrf.mxu0
    %v533 = vadd.f32 %v495, %v532
    %534 = vmatmul.f32.gmra.mxu0 %v270
    %v535 = vpop.f32.mrf.mxu0
    %v536 = vadd.f32 %v498, %v535
    %537 = vmatmul.f32.gmra.mxu0 %v273
    %v538 = vpop.f32.mrf.mxu0
    %v539 = vadd.f32 %v501, %v538
    %540 = vmatmul.f32.gmra.mxu0 %v276
    %v541 = vpop.f32.mrf.mxu0
    %v542 = vadd.f32 %v504, %v541
    %543 = vdwg.mxu0
    %v544 = vadd.f32 %v524, %v527
    %v545 = vadd.f32 %v544, %v530
    %v546 = vadd.f32 %v545, %v533
    %v547 = vadd.f32 %v546, %v536
    %v548 = vadd.f32 %v547, %v539
    %vm549 = vcmask 1040384
    %v550 = vsel %vm549, %v542, 0.0
    %v551 = vadd.f32 %v548, %v550
    %v552 = vrot.slane %v551, 4
    %v553 = vadd.f32 %v551, %v552
    %v554 = vrot.slane %v553, 2
    %v555 = vadd.f32 %v553, %v554
    %v556 = vrot.slane %v555, 1
    %v557 = vadd.f32 %v555, %v556
    %v558 = vrcp.pop 49.0
    %v559 = vmul.f32 49.0, %v558
    %v560 = vsub.f32 1.0, %v559
    %v561 = vmul.f32 %v558, %v560
    %v562 = vadd.f32 %v558, %v561
    %vm563 = vweird.f32 %v558
    %v564 = vsel %vm563, %v558, %v562
    %v565 = vmul.f32 %v557, %v564
    %v566 = vsub.f32 %v524, %v565
    %v567 = vsub.f32 %v527, %v565
    %v568 = vsub.f32 %v530, %v565
    %v569 = vsub.f32 %v533, %v565
    %v570 = vsub.f32 %v536, %v565
    %v571 = vsub.f32 %v539, %v565
    %v572 = vsub.f32 %v542, %v565
    %v573 = vmul.f32 %v566, %v566
    %v574 = vmul.f32 %v567, %v567
    %v575 = vmul.f32 %v568, %v568
    %v576 = vmul.f32 %v569, %v569
    %v577 = vmul.f32 %v570, %v570
    %v578 = vmul.f32 %v571, %v571
    %v579 = vmul.f32 %v572, %v572
    %v580 = vadd.f32 %v573, %v574
    %v581 = vadd.f32 %v580, %v575
    %v582 = vadd.f32 %v581, %v576
    %v583 = vadd.f32 %v582, %v577
    %v584 = vadd.f32 %v583, %v578
    %v585 = vsel %vm549, %v579, 0.0
    %v586 = vadd.f32 %v584, %v585
    %v587 = vrot.slane %v586, 4
    %v588 = vadd.f32 %v586, %v587
    %v589 = vrot.slane %v588, 2
    %v590 = vadd.f32 %v588, %v589
    %v591 = vrot.slane %v590, 1
    %v592 = vadd.f32 %v590, %v591
    %v593 = vmul.f32 %v592, %v564
    %v594 = vadd.f32 %v593, 1e-05
    %v595 = vrsqrt.pop %v594
    %v596 = vmul.f32 %v595, %v594
    %v597 = vmul.f32 %v596, %v595
    %v598 = vmul.f32 0.5, %v597
    %v599 = vsub.f32 1.5, %v598
    %v600 = vmul.f32 %v595, %v599
    %vm601 = vweird.f32 %v594
    %vm602 = vweird.f32 %v595
    %vm603 = vmor %vm601, %vm602
    %v604 = vsel %vm603, %v595, %v600
    %v605 = vld [vmem:[%s2] sm:$0x1]
    %v606 = vmul.f32 %v604, %v605
    %v607 = vperm.slane %v606, 0
    %v608 = vmul.f32 %v566, %v607
    %v609 = vmul.f32 %v567, %v607
    %v610 = vmul.f32 %v568, %v607
    %v611 = vmul.f32 %v569, %v607
    %v612 = vmul.f32 %v570, %v607
    %v613 = vmul.f32 %v571, %v607
    %v614 = vmul.f32 %v572, %v607
    %v615 = vld [vmem:[%s3] sm:$0x1]
    %v617 = vperm.slane %v615, 0
    %v619 = vadd.f32 %v608, %v617
    %v620 = vadd.f32 %v609, %v617
    %v621 = vadd.f32 %v610, %v617
    %v622 = vadd.f32 %v611, %v617
    %v623 = vadd.f32 %v612, %v617
    %v624 = vadd.f32 %v613, %v617
    %v625 = vadd.f32 %v614, %v617
    %626 = vst [vmem:[#allocation7] sm:$0xff] %v619
    %627 = vst [vmem:[#allocation7 + $0x8] sm:$0xff] %v620
    %628 = vst [vmem:[#allocation7 + $0x10] sm:$0xff] %v621
    %629 = vst [vmem:[#allocation7 + $0x18] sm:$0xff] %v622
    %630 = vst [vmem:[#allocation7 + $0x20] sm:$0xff] %v623
    %631 = vst [vmem:[#allocation7 + $0x28] sm:$0xff] %v624
    %632 = vst [vmem:[#allocation7 + $0x30] sm:$0x1] %v625
    // Predicated region
    $region26: #{tpu_custom_call.1} parent=1 // pred_check
      _
    $region27: #{tpu_custom_call.1} parent=1 // pred_check_branch
      %634 = sbr.rel (0) target = $region29
    $region28: #{tpu_custom_call.1} parent=1 // pred_region
      %636 = vsyncadd [#allocation4], 0
      %s637 = sshll.u32 [#allocation7], 4
      %s638 = int_to_ptr.vmem [resolvable:$true] %s637
      %s639 = sshll.u32 %s4, 4
      %s640 = int_to_ptr.hbm [resolvable:$true] %s639
      %645 = dma.vmem_to_hbm [thread:$0]  %s638, 896, %s640, [#allocation4], 128, 128, 8
    $region29: #{tpu_custom_call.1} parent=1 // pred_fallthru
      _
    // Predicated region
    $region30: #{tpu_custom_call.1} parent=1 // pred_check
      _
    $region31: #{tpu_custom_call.1} parent=1 // pred_check_branch
      %647 = sbr.rel (0) target = $region33
    $region32: #{tpu_custom_call.1} parent=1 // pred_region
      %649 = dma.done [#allocation4], 896
    $region33: #{tpu_custom_call.1} parent=1 // pred_fallthru
      _
    %650 = vsyncpa [#allocation3], 1
    %651 = vsyncpa [#allocation6], 1
    %652 = vsyncpa [#allocation4], 1

</llo_original>
